<compile_context>
chip_gen: v5e
topology: v5e:2x2
jax: 0.10.0
libtpu: 0.0.40
codegen_flags: <defaults>
</compile_context>

<pallas_src>
import functools

import numpy as np
import jax
import jax.numpy as jnp
from jax.experimental import pallas as pl
from jax.experimental.pallas import tpu as pltpu

_HAS_ONCHIP_PRNG = hasattr(pltpu, "prng_seed") and hasattr(pltpu, "stateful_normal")


# ---------------------------------------------------------------------------
# Small helpers
# ---------------------------------------------------------------------------

def _round_up(x, m):
    return ((x + m - 1) // m) * m


def _pad2(a, rows, cols):
    r, c = a.shape
    if r == rows and c == cols:
        return a                      # no pad copy when already aligned
    return jnp.pad(a, ((0, rows - r), (0, cols - c)))


def _sublane(*dtypes):
    # 8 rows per vreg sublane tile for 4-byte dtypes, 16 for bf16 packing.
    return max(8, max(32 // np.dtype(d).itemsize for d in dtypes))


def _largest_divisor_tile(dim_padded, cap, step=128):
    # Largest multiple of `step` <= cap that divides dim_padded (dim_padded % step == 0).
    t = min(cap, dim_padded)
    t -= t % step
    while t > step and dim_padded % t != 0:
        t -= step
    return t


def _apply_act(y, act_func):
    if act_func == "ReLU":
        return jnp.maximum(y, 0.0)
    if act_func == "Sigmoid":
        return jax.nn.sigmoid(y)
    if act_func == "Tanh":
        return jnp.tanh(y)
    if act_func == "Softplus":
        return jax.nn.softplus(y)
    if act_func is None:
        return y
    raise NotImplementedError(act_func)


def _choose_tiles(B, n_in, n_out, tm, tn, tk, sub):
    """Pick (tm, tn, tk) and padded (Bp, Np, Kp). Lane dims multiples of 128, sublane of `sub`."""
    tn_auto = tn is None
    if tm is None:
        tm = min(256, _round_up(B, sub))
    else:
        tm = _round_up(tm, sub)
    Bp = _round_up(B, tm)

    if tn is None:
        Np = _round_up(n_out, 128)
        tn = _largest_divisor_tile(Np, 512)
    else:
        Np = _round_up(n_out, tn)

    if tk is None:
        Kp = _round_up(n_in, 128)
        tk = _largest_divisor_tile(Kp, 512)
    else:
        Kp = _round_up(n_in, tk)

    # v7x: expose >= 2 blocks on the "parallel" (M, N) axes so both TensorCores get work.
    if tn_auto and (Bp // tm) * (Np // tn) < 2 and Np >= 256:
        half = (Np // 256) * 128
        tn = half if (half > 0 and Np % half == 0) else 128
    return tm, tn, tk, Bp, Np, Kp


# ---------------------------------------------------------------------------
# Kernels
# ---------------------------------------------------------------------------

def _sample_w_eps_kernel(wmu_ref, wsig_ref, epsw_ref, w_ref, *, coef_sample):
    """W = W_mu + coef * W_sigma * eps_w (explicit eps), f32 math, stored in w_ref.dtype."""
    w = (wmu_ref[...].astype(jnp.float32)
         + coef_sample * wsig_ref[...].astype(jnp.float32)
         * epsw_ref[...].astype(jnp.float32))
    w_ref[...] = w.astype(w_ref.dtype)


def _sample_w_prng_kernel(seed_ref, wmu_ref, wsig_ref, w_ref, *, coef_sample):
    """Same as above but eps_w ~ N(0,1) is generated on-chip (one HBM read fewer)."""
    i = pl.program_id(0)
    j = pl.program_id(1)
    # Distinct, deterministic stream per (K, N) tile.
    pltpu.prng_seed(seed_ref[0] + i * pl.num_programs(1) + j)
    eps = pltpu.stateful_normal(w_ref.shape, jnp.float32)
    w = (wmu_ref[...].astype(jnp.float32)
         + coef_sample * wsig_ref[...].astype(jnp.float32) * eps)
    w_ref[...] = w.astype(w_ref.dtype)


def _linear_bias_act_kernel(x_ref, w_ref, b_ref, out_ref, acc_ref, *, act_func):
    """out = act(X @ W + b), (M, N, K) grid with K innermost, f32 VMEM accumulator."""
    k = pl.program_id(2)
    nk = pl.num_programs(2)

    @pl.when(k == 0)
    def _():
        acc_ref[...] = jnp.zeros_like(acc_ref)

    acc_ref[...] += jnp.dot(x_ref[...], w_ref[...],
                            preferred_element_type=jnp.float32)

    @pl.when(k == nk - 1)
    def _():
        y = acc_ref[...] + b_ref[...]          # bias block is f32, broadcast over rows
        out_ref[...] = _apply_act(y, act_func).astype(out_ref.dtype)


# ---------------------------------------------------------------------------
# Pallas-call wrappers
# ---------------------------------------------------------------------------

def sample_weights(W_mu, W_sigma, eps_w=None, *, coef_sample=1.0, seed=0,
                   weight_dtype=None, tk=128, tn=128, Kp=None, Np=None,
                   vmem_limit_bytes=40 * 1024 * 1024):
    """Materialize the sampled W exactly once at padded (Kp, Np) shape."""
    n_in, n_out = W_mu.shape
    if weight_dtype is None:
        weight_dtype = W_mu.dtype
    if Kp is None:
        Kp = _round_up(n_in, tk)
    if Np is None:
        Np = _round_up(n_out, tn)

    Wmu_p = _pad2(W_mu, Kp, Np)
    Wsig_p = _pad2(W_sigma, Kp, Np)
    grid = (Kp // tk, Np // tn)
    blk = (tk, tn)
    p_bytes = np.dtype(W_mu.dtype).itemsize
    o_bytes = np.dtype(weight_dtype).itemsize

    if eps_w is None and _HAS_ONCHIP_PRNG:
        try:
            kernel = functools.partial(_sample_w_prng_kernel,
                                       coef_sample=float(coef_sample))
            cost = pl.CostEstimate(
                flops=int(2 * Kp * Np), transcendentals=int(Kp * Np),
                bytes_accessed=int(Kp * Np * (2 * p_bytes + o_bytes)))
            W_p = pl.pallas_call(
                kernel,
                out_shape=jax.ShapeDtypeStruct((Kp, Np), weight_dtype),
                grid_spec=pltpu.PrefetchScalarGridSpec(
                    num_scalar_prefetch=1,
                    grid=grid,
                    in_specs=[pl.BlockSpec(blk, lambda i, j, s: (i, j)),
                              pl.BlockSpec(blk, lambda i, j, s: (i, j))],
                    out_specs=pl.BlockSpec(blk, lambda i, j, s: (i, j))),
                compiler_params=pltpu.CompilerParams(
                    dimension_semantics=("arbitrary", "arbitrary"),
                    vmem_limit_bytes=vmem_limit_bytes),
                cost_estimate=cost,
            )(jnp.asarray([seed], dtype=jnp.int32), Wmu_p, Wsig_p)
            W_p.block_until_ready()
            return W_p
        except Exception:
            pass  # graceful fallback: host-side eps + explicit-eps kernel below

    if eps_w is None:
        eps_w = jax.random.normal(jax.random.fold_in(jax.random.PRNGKey(seed), 0),
                                  (n_in, n_out), jnp.float32)
    Ew_p = _pad2(eps_w, Kp, Np)
    e_bytes = np.dtype(Ew_p.dtype).itemsize

    kernel = functools.partial(_sample_w_eps_kernel, coef_sample=float(coef_sample))
    cost = pl.CostEstimate(
        flops=int(2 * Kp * Np), transcendentals=0,
        bytes_accessed=int(Kp * Np * (2 * p_bytes + e_bytes + o_bytes)))
    return pl.pallas_call(
        kernel,
        out_shape=jax.ShapeDtypeStruct((Kp, Np), weight_dtype),
        grid_spec=pltpu.PrefetchScalarGridSpec(
            num_scalar_prefetch=0,
            grid=grid,
            in_specs=[pl.BlockSpec(blk, lambda i, j: (i, j)),
                      pl.BlockSpec(blk, lambda i, j: (i, j)),
                      pl.BlockSpec(blk, lambda i, j: (i, j))],
            out_specs=pl.BlockSpec(blk, lambda i, j: (i, j))),
        compiler_params=pltpu.CompilerParams(
            dimension_semantics=("parallel", "parallel"),
            vmem_limit_bytes=vmem_limit_bytes),
        cost_estimate=cost,
    )(Wmu_p, Wsig_p, Ew_p)


def linear_bias_act(X, W, b, *, act_func, tm, tn, tk, Bp, Np, Kp,
                    vmem_limit_bytes=40 * 1024 * 1024):
    """out = act(X @ W + b) on the padded problem; returns the padded (Bp, Np) output."""
    Xp = _pad2(X, Bp, Kp)
    Wp = _pad2(W, Kp, Np)                                     # no-op for pre-padded sampled W
    bp = _pad2(jnp.asarray(b, jnp.float32).reshape(1, -1), 1, Np)

    grid = (Bp // tm, Np // tn, Kp // tk)
    n_i, n_j = grid[0], grid[1]
    kernel = functools.partial(_linear_bias_act_kernel, act_func=act_func)

    bytes_accessed = int(Xp.size * Xp.dtype.itemsize * n_j
                         + Wp.size * Wp.dtype.itemsize * n_i
                         + bp.size * 4 * n_i
                         + Bp * Np * np.dtype(X.dtype).itemsize)
    transc = 0 if act_func in ("ReLU", None) else int(Bp * Np)
    cost = pl.CostEstimate(flops=int(2 * Bp * Kp * Np), transcendentals=transc,
                           bytes_accessed=bytes_accessed)

    return pl.pallas_call(
        kernel,
        out_shape=jax.ShapeDtypeStruct((Bp, Np), X.dtype),
        grid_spec=pltpu.PrefetchScalarGridSpec(
            num_scalar_prefetch=0,
            grid=grid,
            in_specs=[
                pl.BlockSpec((tm, tk), lambda i, j, k: (i, k)),   # X
                pl.BlockSpec((tk, tn), lambda i, j, k: (k, j)),   # W (sampled or W_mu)
                pl.BlockSpec((1, tn), lambda i, j, k: (0, j)),    # bias (f32)
            ],
            out_specs=pl.BlockSpec((tm, tn), lambda i, j, k: (i, j)),
            scratch_shapes=[pltpu.VMEM((tm, tn), jnp.float32)]),
        compiler_params=pltpu.CompilerParams(
            dimension_semantics=("parallel", "parallel", "arbitrary"),
            vmem_limit_bytes=vmem_limit_bytes),
        cost_estimate=cost,
    )(Xp, Wp, bp)


# ---------------------------------------------------------------------------
# Module-level forward wrappers
# ---------------------------------------------------------------------------

def bnn_layer_forward(X, W_mu, W_sigma, b_mu, b_sigma, eps_w=None, eps_b=None, *,
                      coef_sample=1.0, act_func="ReLU", seed=0,
                      weight_dtype=None, tm=None, tn=None, tk=None,
                      vmem_limit_bytes=40 * 1024 * 1024):
    """Sampled forward (flag_mean=False): returns (output, W, b) like the PyTorch module.

    If eps_w is None the weight noise is generated on-chip (pltpu.prng_seed +
    pltpu.stateful_normal, seeded per tile from `seed`), saving a weight-sized HBM read.
    """
    B, n_in = X.shape
    n_in_w, n_out = W_mu.shape
    assert n_in_w == n_in
    if weight_dtype is None:
        weight_dtype = W_mu.dtype

    sub = _sublane(X.dtype, weight_dtype)
    tm, tn, tk, Bp, Np, Kp = _choose_tiles(B, n_in, n_out, tm, tn, tk, sub)

    # (1) Sampled weights, materialized exactly once (padded, lane-dense).
    W_p = sample_weights(W_mu, W_sigma, eps_w, coef_sample=coef_sample, seed=seed,
                         weight_dtype=weight_dtype, tk=tk, tn=tn, Kp=Kp, Np=Np,
                         vmem_limit_bytes=vmem_limit_bytes)

    # (2) Sampled bias: n_output elements — negligible, computed as one fused XLA op.
    if eps_b is None:
        eps_b = jax.random.normal(jax.random.fold_in(jax.random.PRNGKey(seed), 1),
                                  (n_out,), jnp.float32)
    b = (b_mu.astype(jnp.float32)
         + float(coef_sample) * b_sigma.astype(jnp.float32) * eps_b.astype(jnp.float32))

    # (3) out = act(X @ W + b), streaming only the sampled W per M-tile.
    out_p = linear_bias_act(X, W_p, b, act_func=act_func, tm=tm, tn=tn, tk=tk,
                            Bp=Bp, Np=Np, Kp=Kp, vmem_limit_bytes=vmem_limit_bytes)

    return out_p[:B, :n_out], W_p[:n_in, :n_out], b.astype(b_mu.dtype)


def bnn_layer_forward_mean(X, W_mu, b_mu, *, act_func="ReLU",
                           tm=None, tn=None, tk=None,
                           vmem_limit_bytes=40 * 1024 * 1024):
    """flag_mean=True path: act(X @ W_mu + b_mu)."""
    B, n_in = X.shape
    n_out = W_mu.shape[1]
    sub = _sublane(X.dtype, W_mu.dtype)
    tm, tn, tk, Bp, Np, Kp = _choose_tiles(B, n_in, n_out, tm, tn, tk, sub)
    out_p = linear_bias_act(X, W_mu, b_mu, act_func=act_func, tm=tm, tn=tn, tk=tk,
                            Bp=Bp, Np=Np, Kp=Kp, vmem_limit_bytes=vmem_limit_bytes)
    return out_p[:B, :n_out]


# ---------------------------------------------------------------------------
# Demo / self-check
# ---------------------------------------------------------------------------

if __name__ == "__main__":
    n_input, n_output = 32, 16
    batch = 8
    init_range = 0.01
    coef_sample = 1.0
    act_func = "ReLU"

    key = jax.random.PRNGKey(0)
    kx, kwmu, kbmu, kwsig, kbsig, kepsw, kepsb = jax.random.split(key, 7)

    # Parameter init mirroring __init__.
    W_mu = init_range * jax.random.normal(kwmu, (n_input, n_output), jnp.float32)
    b_mu = jax.random.uniform(kbmu, (n_output,), jnp.float32,
                              minval=-init_range, maxval=init_range)
    W_sigma = jax.random.uniform(kwsig, (n_input, n_output), jnp.float32,
                                 minval=0.0, maxval=0.3)
    b_sigma = jax.random.uniform(kbsig, (n_output,), jnp.float32,
                                 minval=0.0, maxval=0.3)
    eps_w = jax.random.normal(kepsw, (n_input, n_output), jnp.float32)
    eps_b = jax.random.normal(kepsb, (n_output,), jnp.float32)
    X = jax.random.normal(kx, (batch, n_input), jnp.float32)

    # --- sampled forward, explicit eps (bit-checkable against the reference) ---
    out, W, b = bnn_layer_forward(X, W_mu, W_sigma, b_mu, b_sigma, eps_w, eps_b,
                                  coef_sample=coef_sample, act_func=act_func)
    jax.block_until_ready((out, W, b))
    W_ref = W_mu + coef_sample * W_sigma * eps_w
    b_ref = b_mu + coef_sample * b_sigma * eps_b
    out_ref = jnp.maximum(X @ W_ref + b_ref, 0.0)
    assert jnp.allclose(out, out_ref, atol=1e-5, rtol=1e-5)
    assert jnp.allclose(W, W_ref, atol=1e-6, rtol=1e-6)
    assert jnp.allclose(b, b_ref, atol=1e-6, rtol=1e-6)

    # --- flag_mean=True path ----------------------------------------------------
    out_mean = bnn_layer_forward_mean(X, W_mu, b_mu, act_func=act_func)
    jax.block_until_ready(out_mean)
    assert jnp.allclose(out_mean, jnp.maximum(X @ W_mu + b_mu, 0.0),
                        atol=1e-5, rtol=1e-5)

    # --- sampled forward, on-chip eps_w generation -------------------------------
    out_s, W_s, b_s = bnn_layer_forward(X, W_mu, W_sigma, b_mu, b_sigma,
                                        coef_sample=coef_sample, act_func=act_func,
                                        seed=1234)
    jax.block_until_ready((out_s, W_s, b_s))
    # Consistency: out must equal act(X @ W_s + b_s) for whatever eps was drawn.
    assert jnp.allclose(out_s, jnp.maximum(X @ W_s + b_s, 0.0), atol=1e-5, rtol=1e-5)
    assert bool(jnp.all(jnp.isfinite(W_s)))
    eps_eff = (W_s - W_mu) / (coef_sample * W_sigma)
    assert 0.1 < float(jnp.std(eps_eff)) < 10.0
    assert abs(float(jnp.mean(eps_eff))) < 2.0

    # --- bf16 parameter / activation streams (f32 accumulation) ------------------
    Xb = X.astype(jnp.bfloat16)
    out_b, W_b, b_b = bnn_layer_forward(Xb,
                                        W_mu.astype(jnp.bfloat16),
                                        W_sigma.astype(jnp.bfloat16),
                                        b_mu.astype(jnp.bfloat16),
                                        b_sigma.astype(jnp.bfloat16),
                                        eps_w, eps_b,
                                        coef_sample=coef_sample, act_func=act_func)
    jax.block_until_ready((out_b, W_b, b_b))
    out_b_ref = jnp.maximum(Xb.astype(jnp.float32) @ W_b.astype(jnp.float32)
                            + b_b.astype(jnp.float32), 0.0)
    assert jnp.allclose(out_b.astype(jnp.float32), out_b_ref, atol=5e-2, rtol=5e-2)
    assert jnp.allclose(W_b.astype(jnp.float32), W_ref, atol=2e-2, rtol=2e-2)

    # --- multi-tile sanity check: exercises the (M, N, K) grid, K-reduction
    #     accumulator, padding of unaligned shapes, and the separate sampling kernel.
    B2, K2, N2 = 16, 200, 384
    key2 = jax.random.PRNGKey(1)
    k2x, k2wmu, k2bmu, k2wsig, k2bsig, k2ew, k2eb = jax.random.split(key2, 7)
    X2 = jax.random.normal(k2x, (B2, K2), jnp.float32)
    Wmu2 = 0.02 * jax.random.normal(k2wmu, (K2, N2), jnp.float32)
    bmu2 = jax.random.uniform(k2bmu, (N2,), jnp.float32, minval=-0.01, maxval=0.01)
    Wsig2 = jax.random.uniform(k2wsig, (K2, N2), jnp.float32, minval=0.0, maxval=0.3)
    bsig2 = jax.random.uniform(k2bsig, (N2,), jnp.float32, minval=0.0, maxval=0.3)
    ew2 = jax.random.normal(k2ew, (K2, N2), jnp.float32)
    eb2 = jax.random.normal(k2eb, (N2,), jnp.float32)

    out2, Ws2, bs2 = bnn_layer_forward(X2, Wmu2, Wsig2, bmu2, bsig2, ew2, eb2,
                                       coef_sample=coef_sample, act_func=act_func,
                                       tm=8, tn=128, tk=128)
    jax.block_until_ready((out2, Ws2, bs2))
    W2_ref = Wmu2 + coef_sample * Wsig2 * ew2
    b2_ref = bmu2 + coef_sample * bsig2 * eb2
    out2_ref = jnp.maximum(X2 @ W2_ref + b2_ref, 0.0)
    assert jnp.allclose(out2, out2_ref, atol=1e-4, rtol=1e-4)
    assert jnp.allclose(Ws2, W2_ref, atol=1e-6, rtol=1e-6)
    assert jnp.allclose(bs2, b2_ref, atol=1e-6, rtol=1e-6)

    print("KERNEL_OK")
</pallas_src>

<mosaic_0001>
module attributes {stable_mosaic.version = 11 : i64} {
  func.func @_sample_w_eps_kernel(%arg0: i32, %arg1: i32, %arg2: memref<128x128xf32, #tpu.memory_space<vmem>>, %arg3: memref<128x128xf32, #tpu.memory_space<vmem>>, %arg4: memref<128x128xf32, #tpu.memory_space<vmem>>, %arg5: memref<128x128xf32, #tpu.memory_space<vmem>>) attributes {dimension_semantics = [#tpu.dimension_semantics<parallel>, #tpu.dimension_semantics<parallel>], iteration_bounds = array<i64: 1, 1>, scalar_prefetch = 0 : i64, scratch_operands = 0 : i64, tpu.core_type = #tpu.core_type<tc>, window_params = [{transform_indices = @transform_0, window_bounds = array<i64: 128, 128>}, {transform_indices = @transform_1, window_bounds = array<i64: 128, 128>}, {transform_indices = @transform_2, window_bounds = array<i64: 128, 128>}, {transform_indices = @transform_3, window_bounds = array<i64: 128, 128>}]} {
    %c0 = arith.constant 0 : index
    %c0_0 = arith.constant 0 : index
    %0 = vector.load %arg2[%c0, %c0_0] : memref<128x128xf32, #tpu.memory_space<vmem>>, vector<128x128xf32>
    %c0_1 = arith.constant 0 : index
    %c0_2 = arith.constant 0 : index
    %1 = vector.load %arg3[%c0_1, %c0_2] : memref<128x128xf32, #tpu.memory_space<vmem>>, vector<128x128xf32>
    %cst = arith.constant 1.000000e+00 : f32
    %2 = vector.broadcast %cst : f32 to vector<128x128xf32>
    %3 = arith.mulf %2, %1 : vector<128x128xf32>
    %c0_3 = arith.constant 0 : index
    %c0_4 = arith.constant 0 : index
    %4 = vector.load %arg4[%c0_3, %c0_4] : memref<128x128xf32, #tpu.memory_space<vmem>>, vector<128x128xf32>
    %5 = arith.mulf %3, %4 : vector<128x128xf32>
    %6 = arith.addf %0, %5 : vector<128x128xf32>
    %c0_5 = arith.constant 0 : index
    %c0_6 = arith.constant 0 : index
    %7 = vector.load %arg5[%c0_5, %c0_6] : memref<128x128xf32, #tpu.memory_space<vmem>>, vector<128x128xf32>
    tpu.vector_store %arg5[%c0_5, %c0_6], %6 {strides = array<i32>} : memref<128x128xf32, #tpu.memory_space<vmem>>, vector<128x128xf32>,
    return
  }
  func.func @transform_0(%arg0: i32, %arg1: i32) -> (i32, i32) {
    %c0_i32 = arith.constant 0 : i32
    return %arg0, %arg1 : i32, i32
  }
  func.func @transform_1(%arg0: i32, %arg1: i32) -> (i32, i32) {
    %c0_i32 = arith.constant 0 : i32
    return %arg0, %arg1 : i32, i32
  }
  func.func @transform_2(%arg0: i32, %arg1: i32) -> (i32, i32) {
    %c0_i32 = arith.constant 0 : i32
    return %arg0, %arg1 : i32, i32
  }
  func.func @transform_3(%arg0: i32, %arg1: i32) -> (i32, i32) {
    %c0_i32 = arith.constant 0 : i32
    return %arg0, %arg1 : i32, i32
  }
}

</mosaic_0001>

<llo_original>
// kernel: tpu_custom_call.1
$region0: #{tpu_custom_call.1}
  #allocation0 [shape = 'u32[]', space=smem, size = 0x4, offset = 0x4, fixed_abs, tag = 'smem constant byte address 0x4 - core index']
  #allocation1 [shape = 'u32[72,128]{1,0:T(1,128)}', space=vmem, size = 0x9000, scoped, tag = 'internal scratch']
  %s0 = inlined_call_operand.hbm [shape: f32[128,128], index: 0, kind: input, shape index: {}]
  %s1 = inlined_call_operand.hbm [shape: f32[128,128], index: 1, kind: input, shape index: {}]
  %s2 = inlined_call_operand.hbm [shape: f32[128,128], index: 2, kind: input, shape index: {}]
  %s3 = inlined_call_operand.hbm [shape: f32[128,128], index: 3, kind: output, shape index: {}]
  %s4 = sld [smem:[#allocation0]]
  $region34: #{tpu_custom_call.1} parent=0
    _
  %s6 = ssub.s32 1, %s4
  %s7 = scalar_select 0, %s6, %s4
  $region1: #{tpu_custom_call.1} parent=0
    #allocation2 [shape = 'u8[65536]{0}', space=vmem, size = 0x10000, scoped, tag = 'input window, operand 0, single buffered']
    #allocation3 [shape = 's32[1]{0}', space=sflag, size = 0x4, scoped, tag = 'scoped memory for tpu_custom_call.1']
    #allocation4 [shape = 's32[1]{0}', space=sflag, size = 0x4, scoped, tag = 'scoped memory for tpu_custom_call.1']
    #allocation5 [shape = 'u8[65536]{0}', space=vmem, size = 0x10000, scoped, tag = 'input window, operand 1, single buffered']
    #allocation6 [shape = 's32[1]{0}', space=sflag, size = 0x4, scoped, tag = 'scoped memory for tpu_custom_call.1']
    #allocation7 [shape = 'u8[65536]{0}', space=vmem, size = 0x10000, scoped, tag = 'input window, operand 2, single buffered']
    #allocation8 [shape = 'u8[65536]{0}', space=vmem, size = 0x10000, scoped, tag = 'output window, operand 0, single buffered']
    %8 = vsyncpa [#allocation3], 0
    %9 = vsyncpa [#allocation6], 0
    %10 = vsyncpa [#allocation4], 0
    // Predicated region
    $region2: #{tpu_custom_call.1} parent=1 // pred_check
      _
    $region3: #{tpu_custom_call.1} parent=1 // pred_check_branch
      %12 = sbr.rel (0) target = $region5
    $region4: #{tpu_custom_call.1} parent=1 // pred_region
      %14 = vsyncadd [#allocation3], 0
      %s15 = sshll.u32 %s0, 4
      %s16 = int_to_ptr.hbm [resolvable:$true] %s15
      %s17 = sshll.u32 [#allocation2], 4
      %s18 = int_to_ptr.vmem [resolvable:$true] %s17
      %23 = dma.hbm_to_vmem [thread:$0]  %s16, 2048, %s18, [#allocation3], 128, 128, 8
    $region5: #{tpu_custom_call.1} parent=1 // pred_fallthru
      _
    // Predicated region
    $region6: #{tpu_custom_call.1} parent=1 // pred_check
      _
    $region7: #{tpu_custom_call.1} parent=1 // pred_check_branch
      %25 = sbr.rel (0) target = $region9
    $region8: #{tpu_custom_call.1} parent=1 // pred_region
      %27 = vsyncadd [#allocation6], 0
      %s28 = sshll.u32 %s1, 4
      %s29 = int_to_ptr.hbm [resolvable:$true] %s28
      %s30 = sshll.u32 [#allocation5], 4
      %s31 = int_to_ptr.vmem [resolvable:$true] %s30
      %36 = dma.hbm_to_vmem [thread:$0]  %s29, 2048, %s31, [#allocation6], 128, 128, 8
    $region9: #{tpu_custom_call.1} parent=1 // pred_fallthru
      _
    // Predicated region
    $region10: #{tpu_custom_call.1} parent=1 // pred_check
      _
    $region11: #{tpu_custom_call.1} parent=1 // pred_check_branch
      %38 = sbr.rel (0) target = $region13
    $region12: #{tpu_custom_call.1} parent=1 // pred_region
      %40 = vsyncadd [#allocation6], 0
      %s41 = sshll.u32 %s2, 4
      %s42 = int_to_ptr.hbm [resolvable:$true] %s41
      %s43 = sshll.u32 [#allocation7], 4
      %s44 = int_to_ptr.vmem [resolvable:$true] %s43
      %49 = dma.hbm_to_vmem [thread:$0]  %s42, 2048, %s44, [#allocation6], 128, 128, 8
    $region13: #{tpu_custom_call.1} parent=1 // pred_fallthru
      _
    // Predicated region
    $region14: #{tpu_custom_call.1} parent=1 // pred_check
      _
    $region15: #{tpu_custom_call.1} parent=1 // pred_check_branch
      %51 = sbr.rel (0) target = $region17
    $region16: #{tpu_custom_call.1} parent=1 // pred_region
      %53 = dma.done [#allocation3], 2048
    $region17: #{tpu_custom_call.1} parent=1 // pred_fallthru
      _
    // Predicated region
    $region18: #{tpu_custom_call.1} parent=1 // pred_check
      _
    $region19: #{tpu_custom_call.1} parent=1 // pred_check_branch
      %55 = sbr.rel (0) target = $region21
    $region20: #{tpu_custom_call.1} parent=1 // pred_region
      %57 = dma.done [#allocation6], 2048
    $region21: #{tpu_custom_call.1} parent=1 // pred_fallthru
      _
    // Predicated region
    $region22: #{tpu_custom_call.1} parent=1 // pred_check
      _
    $region23: #{tpu_custom_call.1} parent=1 // pred_check_branch
      %59 = sbr.rel (0) target = $region25
    $region24: #{tpu_custom_call.1} parent=1 // pred_region
      %61 = dma.done [#allocation6], 2048
    $region25: #{tpu_custom_call.1} parent=1 // pred_fallthru
      _
    %v62 = vld [vmem:[#allocation2] sm:$0xff]
    %v63 = vld [vmem:[#allocation2 + $0x8] sm:$0xff]
    %v64 = vld [vmem:[#allocation2 + $0x10] sm:$0xff]
    %v65 = vld [vmem:[#allocation2 + $0x18] sm:$0xff]
    %v66 = vld [vmem:[#allocation2 + $0x20] sm:$0xff]
    %v67 = vld [vmem:[#allocation2 + $0x28] sm:$0xff]
    %v68 = vld [vmem:[#allocation2 + $0x30] sm:$0xff]
    %v69 = vld [vmem:[#allocation2 + $0x38] sm:$0xff]
    %v70 = vld [vmem:[#allocation2 + $0x40] sm:$0xff]
    %v71 = vld [vmem:[#allocation2 + $0x48] sm:$0xff]
    %v72 = vld [vmem:[#allocation2 + $0x50] sm:$0xff]
    %v73 = vld [vmem:[#allocation2 + $0x58] sm:$0xff]
    %v74 = vld [vmem:[#allocation2 + $0x60] sm:$0xff]
    %v75 = vld [vmem:[#allocation2 + $0x68] sm:$0xff]
    %v76 = vld [vmem:[#allocation2 + $0x70] sm:$0xff]
    %v77 = vld [vmem:[#allocation2 + $0x78] sm:$0xff]
    %v78 = vld [vmem:[#allocation5] sm:$0xff]
    %v79 = vld [vmem:[#allocation5 + $0x8] sm:$0xff]
    %v80 = vld [vmem:[#allocation5 + $0x10] sm:$0xff]
    %v81 = vld [vmem:[#allocation5 + $0x18] sm:$0xff]
    %v82 = vld [vmem:[#allocation5 + $0x20] sm:$0xff]
    %v83 = vld [vmem:[#allocation5 + $0x28] sm:$0xff]
    %v84 = vld [vmem:[#allocation5 + $0x30] sm:$0xff]
    %v85 = vld [vmem:[#allocation5 + $0x38] sm:$0xff]
    %v86 = vld [vmem:[#allocation5 + $0x40] sm:$0xff]
    %v87 = vld [vmem:[#allocation5 + $0x48] sm:$0xff]
    %v88 = vld [vmem:[#allocation5 + $0x50] sm:$0xff]
    %v89 = vld [vmem:[#allocation5 + $0x58] sm:$0xff]
    %v90 = vld [vmem:[#allocation5 + $0x60] sm:$0xff]
    %v91 = vld [vmem:[#allocation5 + $0x68] sm:$0xff]
    %v92 = vld [vmem:[#allocation5 + $0x70] sm:$0xff]
    %v93 = vld [vmem:[#allocation5 + $0x78] sm:$0xff]
    %v94 = vld [vmem:[#allocation7] sm:$0xff]
    %v95 = vld [vmem:[#allocation7 + $0x8] sm:$0xff]
    %v96 = vld [vmem:[#allocation7 + $0x10] sm:$0xff]
    %v97 = vld [vmem:[#allocation7 + $0x18] sm:$0xff]
    %v98 = vld [vmem:[#allocation7 + $0x20] sm:$0xff]
    %v99 = vld [vmem:[#allocation7 + $0x28] sm:$0xff]
    %v100 = vld [vmem:[#allocation7 + $0x30] sm:$0xff]
    %v101 = vld [vmem:[#allocation7 + $0x38] sm:$0xff]
    %v102 = vld [vmem:[#allocation7 + $0x40] sm:$0xff]
    %v103 = vld [vmem:[#allocation7 + $0x48] sm:$0xff]
    %v104 = vld [vmem:[#allocation7 + $0x50] sm:$0xff]
    %v105 = vld [vmem:[#allocation7 + $0x58] sm:$0xff]
    %v106 = vld [vmem:[#allocation7 + $0x60] sm:$0xff]
    %v107 = vld [vmem:[#allocation7 + $0x68] sm:$0xff]
    %v108 = vld [vmem:[#allocation7 + $0x70] sm:$0xff]
    %v109 = vld [vmem:[#allocation7 + $0x78] sm:$0xff]
    %v110 = vmul.f32 %v78, %v94
    %v111 = vmul.f32 %v79, %v95
    %v112 = vmul.f32 %v80, %v96
    %v113 = vmul.f32 %v81, %v97
    %v114 = vmul.f32 %v82, %v98
    %v115 = vmul.f32 %v83, %v99
    %v116 = vmul.f32 %v84, %v100
    %v117 = vmul.f32 %v85, %v101
    %v118 = vmul.f32 %v86, %v102
    %v119 = vmul.f32 %v87, %v103
    %v120 = vmul.f32 %v88, %v104
    %v121 = vmul.f32 %v89, %v105
    %v122 = vmul.f32 %v90, %v106
    %v123 = vmul.f32 %v91, %v107
    %v124 = vmul.f32 %v92, %v108
    %v125 = vmul.f32 %v93, %v109
    %v126 = vadd.f32 %v62, %v110
    %v127 = vadd.f32 %v63, %v111
    %v128 = vadd.f32 %v64, %v112
    %v129 = vadd.f32 %v65, %v113
    %v130 = vadd.f32 %v66, %v114
    %v131 = vadd.f32 %v67, %v115
    %v132 = vadd.f32 %v68, %v116
    %v133 = vadd.f32 %v69, %v117
    %v134 = vadd.f32 %v70, %v118
    %v135 = vadd.f32 %v71, %v119
    %v136 = vadd.f32 %v72, %v120
    %v137 = vadd.f32 %v73, %v121
    %v138 = vadd.f32 %v74, %v122
    %v139 = vadd.f32 %v75, %v123
    %v140 = vadd.f32 %v76, %v124
    %v141 = vadd.f32 %v77, %v125
    %142 = vst [vmem:[#allocation8] sm:$0xff] %v126
    %143 = vst [vmem:[#allocation8 + $0x8] sm:$0xff] %v127
    %144 = vst [vmem:[#allocation8 + $0x10] sm:$0xff] %v128
    %145 = vst [vmem:[#allocation8 + $0x18] sm:$0xff] %v129
    %146 = vst [vmem:[#allocation8 + $0x20] sm:$0xff] %v130
    %147 = vst [vmem:[#allocation8 + $0x28] sm:$0xff] %v131
    %148 = vst [vmem:[#allocation8 + $0x30] sm:$0xff] %v132
    %149 = vst [vmem:[#allocation8 + $0x38] sm:$0xff] %v133
    %150 = vst [vmem:[#allocation8 + $0x40] sm:$0xff] %v134
    %151 = vst [vmem:[#allocation8 + $0x48] sm:$0xff] %v135
    %152 = vst [vmem:[#allocation8 + $0x50] sm:$0xff] %v136
    %153 = vst [vmem:[#allocation8 + $0x58] sm:$0xff] %v137
    %154 = vst [vmem:[#allocation8 + $0x60] sm:$0xff] %v138
    %155 = vst [vmem:[#allocation8 + $0x68] sm:$0xff] %v139
    %156 = vst [vmem:[#allocation8 + $0x70] sm:$0xff] %v140
    %157 = vst [vmem:[#allocation8 + $0x78] sm:$0xff] %v141
    // Predicated region
    $region26: #{tpu_custom_call.1} parent=1 // pred_check
      _
    $region27: #{tpu_custom_call.1} parent=1 // pred_check_branch
      %159 = sbr.rel (0) target = $region29
    $region28: #{tpu_custom_call.1} parent=1 // pred_region
      %161 = vsyncadd [#allocation4], 0
      %s162 = sshll.u32 [#allocation8], 4
      %s163 = int_to_ptr.vmem [resolvable:$true] %s162
      %s164 = sshll.u32 %s3, 4
      %s165 = int_to_ptr.hbm [resolvable:$true] %s164
      %170 = dma.vmem_to_hbm [thread:$0]  %s163, 2048, %s165, [#allocation4], 128, 128, 8
    $region29: #{tpu_custom_call.1} parent=1 // pred_fallthru
      _
    // Predicated region
    $region30: #{tpu_custom_call.1} parent=1 // pred_check
      _
    $region31: #{tpu_custom_call.1} parent=1 // pred_check_branch
      %172 = sbr.rel (0) target = $region33
    $region32: #{tpu_custom_call.1} parent=1 // pred_region
      %174 = dma.done [#allocation4], 2048
    $region33: #{tpu_custom_call.1} parent=1 // pred_fallthru
      _
    %175 = vsyncpa [#allocation3], 1
    %176 = vsyncpa [#allocation6], 1
    %177 = vsyncpa [#allocation4], 1

</llo_original>
